<compile_context>
chip_gen: v7x
topology: tpu7x:2x2x1
jax: 0.10.0
libtpu: 0.0.40
codegen_flags: <defaults>
</compile_context>

<pallas_src>
import jax
import jax.numpy as jnp
from jax.experimental import pallas as pl
from jax.experimental.pallas import tpu as pltpu

# Module hyperparameters (from the PyTorch spec)
INPUT_SIZE = 2
HIDDEN_DIM = 32
OUTPUT_SIZE = 16
H1 = INPUT_SIZE * HIDDEN_DIM  # 64

LARGE_TILE_N = 2048  # row tile for large batches (VMEM use stays ~a few MiB)


def _mlp_kernel(x_ref, w1_ref, b1_ref, w2_ref, b2_ref, o_ref):
    x = x_ref[...]                                   # (tile_n, 2)   f32
    w1 = w1_ref[...]                                 # (2, 64)       f32

    # Layer 1 on the VPU: K=2 contraction as two broadcast FMAs.
    # x[:, k:k+1] is (tile_n, 1); w1[k:k+1, :] is (1, 64) -> broadcast (tile_n, 64).
    h = x[:, 0:1] * w1[0:1, :] + x[:, 1:2] * w1[1:2, :] + b1_ref[...]
    h = jnp.maximum(h, 0.0)                          # ReLU

    # Layer 2 on the MXU at its natural 16-column width; f32 accumulation.
    out = jnp.dot(h, w2_ref[...], preferred_element_type=jnp.float32)
    out = out + b2_ref[...]                          # (tile_n, 16) + (1, 16)
    o_ref[...] = out.astype(o_ref.dtype)


def _pick_tile(n):
    """Row tile selection:
       - tiny n: one full-batch block (no (8,128) issue since block == array dim)
       - medium n: split into >= 2 grid steps (both v7x TensorCores get work),
         rounded up to a multiple of 8 (sublane alignment)
       - large n: cap at LARGE_TILE_N to amortize per-step overhead."""
    if n <= 8:
        return n
    half = -(-n // 2)                  # cdiv(n, 2)
    half = ((half + 7) // 8) * 8       # round up to multiple of 8
    return min(LARGE_TILE_N, half)


def neural_pll_forward(x, w1, b1, w2, b2):
    """out = Linear(2,64) -> ReLU -> Linear(64,16) applied to x of shape (N, 2)."""
    n = x.shape[0]

    # Accept PyTorch-style 1-D biases; kernel BlockSpecs expect (1, features).
    b1 = jnp.asarray(b1, jnp.float32).reshape(1, H1)
    b2 = jnp.asarray(b2, jnp.float32).reshape(1, OUTPUT_SIZE)

    tile_n = _pick_tile(n)
    grid = (pl.cdiv(n, tile_n),)       # ragged last block handled by Pallas

    # TODO(synk): for very small batches an XLA-fused MLP avoids the fixed
    # pallas_call launch cost; kept as a kernel here so the demo exercises it.
    return pl.pallas_call(
        _mlp_kernel,
        out_shape=jax.ShapeDtypeStruct((n, OUTPUT_SIZE), jnp.float32),
        grid=grid,
        in_specs=[
            pl.BlockSpec((tile_n, INPUT_SIZE), lambda i: (i, 0)),   # x tile
            pl.BlockSpec((INPUT_SIZE, H1), lambda i: (0, 0)),       # w1 (resident)
            pl.BlockSpec((1, H1), lambda i: (0, 0)),                # b1 (resident)
            pl.BlockSpec((H1, OUTPUT_SIZE), lambda i: (0, 0)),      # w2 (resident)
            pl.BlockSpec((1, OUTPUT_SIZE), lambda i: (0, 0)),       # b2 (resident)
        ],
        out_specs=pl.BlockSpec((tile_n, OUTPUT_SIZE), lambda i: (i, 0)),
        compiler_params=pltpu.CompilerParams(
            dimension_semantics=("parallel",)),                     # megacore on v7x
    )(x, w1, b1, w2, b2)


def init_params(key):
    """Deterministic init mimicking PyTorch's default Linear init (U(-k, k), k=1/sqrt(fan_in))."""
    k1, k2, k3, k4 = jax.random.split(key, 4)
    lim1 = 1.0 / jnp.sqrt(float(INPUT_SIZE))
    lim2 = 1.0 / jnp.sqrt(float(H1))
    w1 = jax.random.uniform(k1, (INPUT_SIZE, H1), jnp.float32, -lim1, lim1)
    b1 = jax.random.uniform(k2, (1, H1), jnp.float32, -lim1, lim1)
    w2 = jax.random.uniform(k3, (H1, OUTPUT_SIZE), jnp.float32, -lim2, lim2)
    b2 = jax.random.uniform(k4, (1, OUTPUT_SIZE), jnp.float32, -lim2, lim2)
    return w1, b1, w2, b2


def make_test_points(key, n):
    """JAX port of generate_test_points: theta in [0, 2*pi), omega in [-10, 10)."""
    omega_e_max = 10.0
    pts = jax.random.uniform(key, (n, 2), jnp.float32)
    scale = jnp.array([[2.0 * jnp.pi, 2.0 * omega_e_max]], jnp.float32)
    shift = jnp.array([[0.0, -omega_e_max]], jnp.float32)
    return pts * scale + shift


if __name__ == "__main__":
    key = jax.random.PRNGKey(0)
    k_params, k_x = jax.random.split(key)

    w1, b1, w2, b2 = init_params(k_params)
    # batch = 16 test points of shape (16, 2), consistent with test_points_number
    x = make_test_points(k_x, 16)

    out = neural_pll_forward(x, w1, b1, w2, b2)
    jax.block_until_ready(out)

    # Cross-check against a plain-JAX reference.
    ref = jnp.maximum(x @ w1 + b1, 0.0) @ w2 + b2
    assert out.shape == (16, OUTPUT_SIZE)
    assert jnp.allclose(out, ref, atol=1e-5, rtol=1e-5)

    print("KERNEL_OK")
</pallas_src>

<mosaic_0001>
module attributes {stable_mosaic.version = 11 : i64} {
  func.func @_mlp_kernel(%arg0: i32, %arg1: memref<8x2xf32, #tpu.memory_space<vmem>>, %arg2: memref<2x64xf32, #tpu.memory_space<vmem>>, %arg3: memref<1x64xf32, #tpu.memory_space<vmem>>, %arg4: memref<64x16xf32, #tpu.memory_space<vmem>>, %arg5: memref<1x16xf32, #tpu.memory_space<vmem>>, %arg6: memref<8x16xf32, #tpu.memory_space<vmem>>) attributes {dimension_semantics = [#tpu.dimension_semantics<parallel>], iteration_bounds = array<i64: 2>, scalar_prefetch = 0 : i64, scratch_operands = 0 : i64, tpu.core_type = #tpu.core_type<tc>, window_params = [{transform_indices = @transform_0, window_bounds = array<i64: 8, 2>}, {pipeline_mode = #tpu.pipeline_mode<synchronous>, transform_indices = @transform_1, window_bounds = array<i64: 2, 64>}, {pipeline_mode = #tpu.pipeline_mode<synchronous>, transform_indices = @transform_2, window_bounds = array<i64: 1, 64>}, {pipeline_mode = #tpu.pipeline_mode<synchronous>, transform_indices = @transform_3, window_bounds = array<i64: 64, 16>}, {pipeline_mode = #tpu.pipeline_mode<synchronous>, transform_indices = @transform_4, window_bounds = array<i64: 1, 16>}, {transform_indices = @transform_5, window_bounds = array<i64: 8, 16>}]} {
    %c0 = arith.constant 0 : index
    %c0_0 = arith.constant 0 : index
    %0 = vector.load %arg1[%c0, %c0_0] : memref<8x2xf32, #tpu.memory_space<vmem>>, vector<8x2xf32>
    %c0_1 = arith.constant 0 : index
    %c0_2 = arith.constant 0 : index
    %1 = vector.load %arg2[%c0_1, %c0_2] : memref<2x64xf32, #tpu.memory_space<vmem>>, vector<2x64xf32>
    %2 = vector.extract_strided_slice %0 {offsets = [0, 0], sizes = [8, 1], strides = [1, 1]} : vector<8x2xf32> to vector<8x1xf32>
    %3 = vector.extract_strided_slice %1 {offsets = [0, 0], sizes = [1, 64], strides = [1, 1]} : vector<2x64xf32> to vector<1x64xf32>
    %4 = vector.broadcast %2 : vector<8x1xf32> to vector<8x64xf32>
    %5 = vector.broadcast %3 : vector<1x64xf32> to vector<8x64xf32>
    %6 = arith.mulf %4, %5 : vector<8x64xf32>
    %7 = vector.extract_strided_slice %0 {offsets = [0, 1], sizes = [8, 1], strides = [1, 1]} : vector<8x2xf32> to vector<8x1xf32>
    %8 = vector.extract_strided_slice %1 {offsets = [1, 0], sizes = [1, 64], strides = [1, 1]} : vector<2x64xf32> to vector<1x64xf32>
    %9 = vector.broadcast %7 : vector<8x1xf32> to vector<8x64xf32>
    %10 = vector.broadcast %8 : vector<1x64xf32> to vector<8x64xf32>
    %11 = arith.mulf %9, %10 : vector<8x64xf32>
    %12 = arith.addf %6, %11 : vector<8x64xf32>
    %c0_3 = arith.constant 0 : index
    %c0_4 = arith.constant 0 : index
    %13 = vector.load %arg3[%c0_3, %c0_4] : memref<1x64xf32, #tpu.memory_space<vmem>>, vector<1x64xf32>
    %14 = vector.broadcast %13 : vector<1x64xf32> to vector<8x64xf32>
    %15 = arith.addf %12, %14 : vector<8x64xf32>
    %cst = arith.constant 0.000000e+00 : f32
    %16 = vector.broadcast %cst : f32 to vector<8x64xf32>
    %17 = arith.maximumf %15, %16 : vector<8x64xf32>
    %c0_5 = arith.constant 0 : index
    %c0_6 = arith.constant 0 : index
    %18 = vector.load %arg4[%c0_5, %c0_6] : memref<64x16xf32, #tpu.memory_space<vmem>>, vector<64x16xf32>
    %cst_7 = arith.constant dense<0.000000e+00> : vector<8x16xf32>
    %19 = tpu.matmul %17, %18, %cst_7 {dimension_numbers = #tpu.dot_dimension_numbers<[1], [0], [0], [1], [0, 0, 1, 1], [], []>} : vector<8x64xf32>, vector<64x16xf32>, vector<8x16xf32> -> vector<8x16xf32>
    %c0_8 = arith.constant 0 : index
    %c0_9 = arith.constant 0 : index
    %20 = vector.load %arg5[%c0_8, %c0_9] : memref<1x16xf32, #tpu.memory_space<vmem>>, vector<1x16xf32>
    %21 = vector.broadcast %20 : vector<1x16xf32> to vector<8x16xf32>
    %22 = arith.addf %19, %21 : vector<8x16xf32>
    %c0_10 = arith.constant 0 : index
    %c0_11 = arith.constant 0 : index
    %23 = vector.load %arg6[%c0_10, %c0_11] : memref<8x16xf32, #tpu.memory_space<vmem>>, vector<8x16xf32>
    tpu.vector_store %arg6[%c0_10, %c0_11], %22 {strides = array<i32>} : memref<8x16xf32, #tpu.memory_space<vmem>>, vector<8x16xf32>,
    return
  }
  func.func @transform_0(%arg0: i32) -> (i32, i32) {
    %c0_i32 = arith.constant 0 : i32
    %c0_i32_0 = arith.constant 0 : i32
    return %arg0, %c0_i32 : i32, i32
  }
  func.func @transform_1(%arg0: i32) -> (i32, i32) {
    %c0_i32 = arith.constant 0 : i32
    %c0_i32_0 = arith.constant 0 : i32
    %c0_i32_1 = arith.constant 0 : i32
    return %c0_i32, %c0_i32_0 : i32, i32
  }
  func.func @transform_2(%arg0: i32) -> (i32, i32) {
    %c0_i32 = arith.constant 0 : i32
    %c0_i32_0 = arith.constant 0 : i32
    %c0_i32_1 = arith.constant 0 : i32
    return %c0_i32, %c0_i32_0 : i32, i32
  }
  func.func @transform_3(%arg0: i32) -> (i32, i32) {
    %c0_i32 = arith.constant 0 : i32
    %c0_i32_0 = arith.constant 0 : i32
    %c0_i32_1 = arith.constant 0 : i32
    return %c0_i32, %c0_i32_0 : i32, i32
  }
  func.func @transform_4(%arg0: i32) -> (i32, i32) {
    %c0_i32 = arith.constant 0 : i32
    %c0_i32_0 = arith.constant 0 : i32
    %c0_i32_1 = arith.constant 0 : i32
    return %c0_i32, %c0_i32_0 : i32, i32
  }
  func.func @transform_5(%arg0: i32) -> (i32, i32) {
    %c0_i32 = arith.constant 0 : i32
    %c0_i32_0 = arith.constant 0 : i32
    return %arg0, %c0_i32 : i32, i32
  }
}

</mosaic_0001>

<llo_original>
// kernel: tpu_custom_call.1
$region0: #{tpu_custom_call.1}
  #allocation0 [shape = 'u32[]', space=smem, size = 0x4, offset = 0x4, fixed_abs, tag = 'smem constant byte address 0x4 - core index']
  #allocation1 [shape = 'u32[144,128]{1,0:T(1,128)}', space=vmem, size = 0x12000, scoped, tag = 'internal scratch']
  %s0 = inlined_call_operand.vmem [shape: f32[16,2], index: 0, kind: input, shape index: {}]
  %s1 = inlined_call_operand.vmem [shape: f32[2,64], index: 1, kind: input, shape index: {}]
  %s2 = inlined_call_operand.vmem [shape: f32[1,64], index: 2, kind: input, shape index: {}]
  %s3 = inlined_call_operand.vmem [shape: f32[64,16], index: 3, kind: input, shape index: {}]
  %s4 = inlined_call_operand.vmem [shape: f32[1,16], index: 4, kind: input, shape index: {}]
  %s5 = inlined_call_operand.hbm [shape: f32[16,16], index: 5, kind: output, shape index: {}]
  %s6 = sld [smem:[#allocation0]]
  $region53: #{tpu_custom_call.1} parent=0
    _
  %s8 = ssub.s32 1, %s6
  %s9 = scalar_select 0, %s8, %s6
  $region1: #{tpu_custom_call.1} parent=0
    #allocation2 [shape = 'u8[8192]{0}', space=vmem, size = 0x2000, scoped, tag = 'output window, operand 0']
    #allocation3 [shape = 's32[2]{0}', space=sflag, size = 0x8, scoped, tag = 'scoped memory for tpu_custom_call.1']
    %10 = vsyncpa [#allocation3], 0
    %s11 = scalar_lea.sflag [#allocation3], 1
    %12 = vsyncpa %s11, 0
    loop: start=0, step=1, limit=4
    $region2: #{tpu_custom_call.1} parent=1 // loop_pre_header
      _
    $region3: #{tpu_custom_call.1} parent=1 // loop_header
      %s14 = sphi 0, %s18
      %p15 = scmp.ge.s32.totalorder %s14, 4
      %s24 = sphi 0, %s26
      %s27 = sphi 0, %s24
      %s28 = sphi 0, %s27
      %s44 = sphi 0, %s28
      %s48 = sphi 0, %s48
      %s50 = sphi 0, %s48
      %s51 = sphi 0, %s50
      %s65 = sphi 0, %s51
      %s69 = sphi 0, %s69
      %s71 = sphi 0, %s69
      %s72 = sphi 0, %s71
      %s86 = sphi 0, %s72
      %s90 = sphi 0, %s90
      %s92 = sphi 0, %s90
      %s93 = sphi 0, %s92
      %s107 = sphi 0, %s93
      %s111 = sphi 0, %s111
      %s113 = sphi 0, %s111
      %s114 = sphi 0, %s113
      %s128 = sphi 0, %s114
      %s134 = sphi 0, %s136
      %s137 = sphi 0, %s134
      %s138 = sphi 0, %s137
      %s154 = sphi 0, %s138
    $region4: #{tpu_custom_call.1} parent=1 // loop_header_branch
      %17 = sbr.rel (%p15) target = $region8
    $region5: #{tpu_custom_call.1} parent=1 // loop_body
      %s19 = ssub.s32 %s14, 1
      %s20 = ssub.s32 %s14, 2
      %s21 = sadd.s32 %s14, 1
      %s22 = ssub.s32 %s14, %s21
      %p23 = scmp.eq.s32.totalorder %s22, 0
      %s25 = sadd.s32 %s24, 1
      %s26 = scalar_select %p23, %s24, %s25
      %p29 = pneg %p23
      %p30 = scmp.eq.s32.totalorder %s14, 1
      %p31 = por %p29, %p30
      %p32 = scmp.ne.s32.totalorder %s24, %s27
      %p33 = scmp.eq.s32.totalorder %s14, 0
      %p34 = por %p32, %p33
      %p35 = scmp.ne.s32.totalorder %s24, %s27
      %p36 = scmp.eq.s32.totalorder %s19, 1
      %p37 = por %p35, %p36
      %p38 = scmp.ne.s32.totalorder %s27, %s28
      %p39 = scmp.eq.s32.totalorder %s19, 0
      %p40 = por %p38, %p39
      %p41 = scmp.ne.s32.totalorder %s27, %s28
      %p42 = scmp.eq.s32.totalorder %s20, 1
      %p43 = por %p41, %p42
      %p45 = scmp.ne.s32.totalorder %s28, %s44
      %p46 = scmp.eq.s32.totalorder %s20, 0
      %p47 = por %p45, %p46
      %s49 = sadd.s32 %s48, 1
      %p52 = scmp.eq.s32.totalorder %s14, 1
      %p53 = scmp.ne.s32.totalorder %s48, %s50
      %p54 = scmp.eq.s32.totalorder %s14, 0
      %p55 = por %p53, %p54
      %p56 = scmp.ne.s32.totalorder %s48, %s50
      %p57 = scmp.eq.s32.totalorder %s19, 1
      %p58 = por %p56, %p57
      %p59 = scmp.ne.s32.totalorder %s50, %s51
      %p60 = scmp.eq.s32.totalorder %s19, 0
      %p61 = por %p59, %p60
      %p62 = scmp.ne.s32.totalorder %s50, %s51
      %p63 = scmp.eq.s32.totalorder %s20, 1
      %p64 = por %p62, %p63
      %p66 = scmp.ne.s32.totalorder %s51, %s65
      %p67 = scmp.eq.s32.totalorder %s20, 0
      %p68 = por %p66, %p67
      %s70 = sadd.s32 %s69, 1
      %p73 = scmp.eq.s32.totalorder %s14, 1
      %p74 = scmp.ne.s32.totalorder %s69, %s71
      %p75 = scmp.eq.s32.totalorder %s14, 0
      %p76 = por %p74, %p75
      %p77 = scmp.ne.s32.totalorder %s69, %s71
      %p78 = scmp.eq.s32.totalorder %s19, 1
      %p79 = por %p77, %p78
      %p80 = scmp.ne.s32.totalorder %s71, %s72
      %p81 = scmp.eq.s32.totalorder %s19, 0
      %p82 = por %p80, %p81
      %p83 = scmp.ne.s32.totalorder %s71, %s72
      %p84 = scmp.eq.s32.totalorder %s20, 1
      %p85 = por %p83, %p84
      %p87 = scmp.ne.s32.totalorder %s72, %s86
      %p88 = scmp.eq.s32.totalorder %s20, 0
      %p89 = por %p87, %p88
      %s91 = sadd.s32 %s90, 1
      %p94 = scmp.eq.s32.totalorder %s14, 1
      %p95 = scmp.ne.s32.totalorder %s90, %s92
      %p96 = scmp.eq.s32.totalorder %s14, 0
      %p97 = por %p95, %p96
      %p98 = scmp.ne.s32.totalorder %s90, %s92
      %p99 = scmp.eq.s32.totalorder %s19, 1
      %p100 = por %p98, %p99
      %p101 = scmp.ne.s32.totalorder %s92, %s93
      %p102 = scmp.eq.s32.totalorder %s19, 0
      %p103 = por %p101, %p102
      %p104 = scmp.ne.s32.totalorder %s92, %s93
      %p105 = scmp.eq.s32.totalorder %s20, 1
      %p106 = por %p104, %p105
      %p108 = scmp.ne.s32.totalorder %s93, %s107
      %p109 = scmp.eq.s32.totalorder %s20, 0
      %p110 = por %p108, %p109
      %s112 = sadd.s32 %s111, 1
      %p115 = scmp.eq.s32.totalorder %s14, 1
      %p116 = scmp.ne.s32.totalorder %s111, %s113
      %p117 = scmp.eq.s32.totalorder %s14, 0
      %p118 = por %p116, %p117
      %p119 = scmp.ne.s32.totalorder %s111, %s113
      %p120 = scmp.eq.s32.totalorder %s19, 1
      %p121 = por %p119, %p120
      %p122 = scmp.ne.s32.totalorder %s113, %s114
      %p123 = scmp.eq.s32.totalorder %s19, 0
      %p124 = por %p122, %p123
      %p125 = scmp.ne.s32.totalorder %s113, %s114
      %p126 = scmp.eq.s32.totalorder %s20, 1
      %p127 = por %p125, %p126
      %p129 = scmp.ne.s32.totalorder %s114, %s128
      %p130 = scmp.eq.s32.totalorder %s20, 0
      %p131 = por %p129, %p130
      %s132 = ssub.s32 %s14, %s21
      %p133 = scmp.eq.s32.totalorder %s132, 0
      %s135 = sadd.s32 %s134, 1
      %s136 = scalar_select %p133, %s134, %s135
      %p139 = pneg %p133
      %p140 = scmp.eq.s32.totalorder %s14, 1
      %p141 = por %p139, %p140
      %p142 = scmp.ne.s32.totalorder %s134, %s137
      %p143 = scmp.eq.s32.totalorder %s14, 0
      %p144 = por %p142, %p143
      %p145 = scmp.ne.s32.totalorder %s134, %s137
      %p146 = scmp.eq.s32.totalorder %s19, 1
      %p147 = por %p145, %p146
      %p148 = scmp.ne.s32.totalorder %s137, %s138
      %p149 = scmp.eq.s32.totalorder %s19, 0
      %p150 = por %p148, %p149
      %p151 = scmp.ne.s32.totalorder %s137, %s138
      %p152 = scmp.eq.s32.totalorder %s20, 1
      %p153 = por %p151, %p152
      %p155 = scmp.ne.s32.totalorder %s138, %s154
      %p156 = scmp.eq.s32.totalorder %s20, 0
      %p157 = por %p155, %p156
      %p158 = scmp.le.s32.totalorder 1, %s14
      %p159 = scmp.lt.s32.totalorder %s14, 3
      %p160 = pnand %p158, %p159
      %p161 = pneg %p160
      // Predicated region
      $region9: #{tpu_custom_call.1} parent=5 // pred_check
        _
      $region10: #{tpu_custom_call.1} parent=5 // pred_check_branch
        %163 = sbr.rel (%p160) target = $region12
      $region11: #{tpu_custom_call.1} parent=5 // pred_region
        %s164 = ssub.s32 %s14, 1
        // Predicated region
        $region13: #{tpu_custom_call.1} parent=11 // pred_check
          %p165 = pneg %p61
        $region14: #{tpu_custom_call.1} parent=11 // pred_check_branch
          %167 = sbr.rel (%p165) target = $region16
        $region15: #{tpu_custom_call.1} parent=11 // pred_region
          _
        $region16: #{tpu_custom_call.1} parent=11 // pred_fallthru
          _
        // Predicated region
        $region17: #{tpu_custom_call.1} parent=11 // pred_check
          %p168 = pneg %p82
        $region18: #{tpu_custom_call.1} parent=11 // pred_check_branch
          %170 = sbr.rel (%p168) target = $region20
        $region19: #{tpu_custom_call.1} parent=11 // pred_region
          _
        $region20: #{tpu_custom_call.1} parent=11 // pred_fallthru
          _
        // Predicated region
        $region21: #{tpu_custom_call.1} parent=11 // pred_check
          %p171 = pneg %p103
        $region22: #{tpu_custom_call.1} parent=11 // pred_check_branch
          %173 = sbr.rel (%p171) target = $region24
        $region23: #{tpu_custom_call.1} parent=11 // pred_region
          _
        $region24: #{tpu_custom_call.1} parent=11 // pred_fallthru
          _
        // Predicated region
        $region25: #{tpu_custom_call.1} parent=11 // pred_check
          %p174 = pneg %p124
        $region26: #{tpu_custom_call.1} parent=11 // pred_check_branch
          %176 = sbr.rel (%p174) target = $region28
        $region27: #{tpu_custom_call.1} parent=11 // pred_region
          _
        $region28: #{tpu_custom_call.1} parent=11 // pred_fallthru
          _
      $region12: #{tpu_custom_call.1} parent=5 // pred_fallthru
        _
      %p177 = scmp.lt.s32.totalorder %s14, 2
      // Predicated region
      $region29: #{tpu_custom_call.1} parent=5 // pred_check
        %p178 = pneg %p177
      $region30: #{tpu_custom_call.1} parent=5 // pred_check_branch
        %180 = sbr.rel (%p178) target = $region32
      $region31: #{tpu_custom_call.1} parent=5 // pred_region
        // Predicated region
        $region33: #{tpu_custom_call.1} parent=31 // pred_check
          %p181 = pneg %p34
        $region34: #{tpu_custom_call.1} parent=31 // pred_check_branch
          %183 = sbr.rel (%p181) target = $region36
        $region35: #{tpu_custom_call.1} parent=31 // pred_region
          %p184 = scmp.lt.s32.totalorder %s14, 1
          %s185 = scalar_select %p184, %s14, 1
          %s186 = smul.addr %s185, 8
          %s187 = scalar_lea.vmem %s0, %s186
        $region36: #{tpu_custom_call.1} parent=31 // pred_fallthru
          _
      $region32: #{tpu_custom_call.1} parent=5 // pred_fallthru
        _
      %p188 = scmp.le.s32.totalorder 1, %s14
      %p189 = scmp.lt.s32.totalorder %s14, 3
      %p190 = pnand %p188, %p189
      %p191 = pneg %p190
      // Predicated region
      $region37: #{tpu_custom_call.1} parent=5 // pred_check
        _
      $region38: #{tpu_custom_call.1} parent=5 // pred_check_branch
        %193 = sbr.rel (%p190) target = $region40
      $region39: #{tpu_custom_call.1} parent=5 // pred_region
        %s194 = ssub.s32 %s14, 1
        %p195 = scmp.lt.s32.totalorder %s19, 1
        %s196 = scalar_select %p195, %s19, 1
        %s197 = smul.addr %s196, 8
        %s198 = scalar_lea.vmem %s0, %s197
        %p199 = pneg %p40
        %p200 = pneg %p37
        %p201 = pneg %p61
        %p202 = pneg %p58
        %p203 = pneg %p82
        %p204 = pneg %p79
        %p205 = pneg %p103
        %p206 = pneg %p100
        %p207 = pneg %p124
        %p208 = pneg %p121
        %p209 = pneg %p150
        %p210 = pneg %p147
        %s211 = sand.u32 %s137, 1
        %s212 = scalar_lea.sflag [#allocation3], %s211
        %s213 = sand.u32 %s137, 1
        %s214 = smul.addr %s213, 8
        %s215 = scalar_lea.vmem [#allocation2], %s214
        %p216 = scmp.lt.s32.totalorder %s19, 1
        %s217 = scalar_select %p216, %s19, 1
        %s218 = smul.addr %s217, 8
        %s219 = scalar_lea.vmem %s0, %s218
        %v220 = vld [vmem:[%s219] sm:$0xff]
        %v221 = vld [vmem:[%s1] sm:$0x3]
        %223 = vset.pattern.permute.xlu0 0
        %224 = vperm.xlu0 %223, %v220
        %v225 = vpop.permute.xlu0 %224
        %v227 = vlaneseq
        %v228 = vshrl.u32 %v227, 7
        %v229 = vsub.s32 0, %v228
        %v230 = vrot.slane %v221, %v229
        %v231 = vmul.f32 %v225, %v230
        %232 = vset.pattern.permute.xlu0 1
        %233 = vperm.xlu0 %232, %v220
        %v234 = vpop.permute.xlu0 %233
        %v236 = vlaneseq
        %v237 = vshrl.u32 %v236, 7
        %v238 = vsub.s32 1, %v237
        %v239 = vrot.slane %v221, %v238
        %v240 = vmul.f32 %v234, %v239
        %v241 = vadd.f32 %v231, %v240
        %v242 = vld [vmem:[%s2] sm:$0x1]
        %v244 = vlaneseq
        %v245 = vshrl.u32 %v244, 7
        %v246 = vsub.s32 0, %v245
        %v247 = vrot.slane %v242, %v246
        %v249 = vadd.f32 %v241, %v247
        %v250 = vmax.f32 %v249, 0.0
        %v251 = vld [vmem:[%s3] sm:$0xff]
        %v252 = vld [vmem:[%s3 + $0x8] sm:$0xff]
        %v253 = vld [vmem:[%s3 + $0x10] sm:$0xff]
        %v254 = vld [vmem:[%s3 + $0x18] sm:$0xff]
        %v255 = vld [vmem:[%s3 + $0x20] sm:$0xff]
        %v256 = vld [vmem:[%s3 + $0x28] sm:$0xff]
        %v257 = vld [vmem:[%s3 + $0x30] sm:$0xff]
        %v258 = vld [vmem:[%s3 + $0x38] sm:$0xff]
        %v259 = vld [vmem:[%s4] sm:$0x1]
        %v261 = vlaneseq
        %v262 = vshrl.u32 %v261, 7
        %v263 = vsub.s32 0, %v262
        %v264 = vrot.slane %v259, %v263
        %vm266 = vcmask 523264
        %v268 = vsel %vm266, %v250, 0
        %270 = vmatprep.subr.mxu0 0.0
        %271 = vmatpush1.msra.mxu0 %v251
        %272 = vmatprep.subr.mxu0 0.0
        %273 = vmatpush1.msra.mxu0 %v252
        %274 = vmatprep.subr.mxu0 0.0
        %275 = vmatpush1.msra.mxu0 %v253
        %276 = vmatprep.subr.mxu0 0.0
        %277 = vmatpush1.msra.mxu0 %v254
        %278 = vmatprep.subr.mxu0 0.0
        %279 = vmatpush1.msra.mxu0 %v255
        %280 = vmatprep.subr.mxu0 0.0
        %281 = vmatpush1.msra.mxu0 %v256
        %282 = vmatprep.subr.mxu0 0.0
        %283 = vmatpush1.msra.mxu0 %v257
        %284 = vmatprep.subr.mxu0 0.0
        %285 = vmatpush1.msra.mxu0 %v258
        %286 = vmatprep.subr.mxu0 0.0
        %287 = vmatpush1.msra.mxu0 0.0
        %288 = vmatprep.subr.mxu0 0.0
        %289 = vmatpush1.msra.mxu0 0.0
        %290 = vmatprep.subr.mxu0 0.0
        %291 = vmatpush1.msra.mxu0 0.0
        %292 = vmatprep.subr.mxu0 0.0
        %293 = vmatpush1.msra.mxu0 0.0
        %294 = vmatprep.subr.mxu0 0.0
        %295 = vmatpush1.msra.mxu0 0.0
        %296 = vmatprep.subr.mxu0 0.0
        %297 = vmatpush1.msra.mxu0 0.0
        %298 = vmatprep.subr.mxu0 0.0
        %299 = vmatpush1.msra.mxu0 0.0
        %300 = vmatprep.subr.mxu0 0.0
        %301 = vmatpush1.msra.mxu0 0.0
        %302 = vmatprep.subr.mxu0 0.0
        %303 = vmatpush1.msra.mxu0 0.0
        %304 = vmatprep.subr.mxu0 0.0
        %305 = vmatpush1.msra.mxu0 0.0
        %306 = vmatprep.subr.mxu0 0.0
        %307 = vmatpush1.msra.mxu0 0.0
        %308 = vmatprep.subr.mxu0 0.0
        %309 = vmatpush1.msra.mxu0 0.0
        %310 = vmatprep.subr.mxu0 0.0
        %311 = vmatpush1.msra.mxu0 0.0
        %312 = vmatprep.subr.mxu0 0.0
        %313 = vmatpush1.msra.mxu0 0.0
        %314 = vmatprep.subr.mxu0 0.0
        %315 = vmatpush1.msra.mxu0 0.0
        %316 = vmatprep.subr.mxu0 0.0
        %317 = vmatpush1.msra.mxu0 0.0
        %318 = vmatprep.subr.mxu0 0.0
        %319 = vmatpush1.msra.mxu0 0.0
        %320 = vmatprep.subr.mxu0 0.0
        %321 = vmatpush1.msra.mxu0 0.0
        %322 = vmatprep.subr.mxu0 0.0
        %323 = vmatpush1.msra.mxu0 0.0
        %324 = vmatprep.subr.mxu0 0.0
        %325 = vmatpush1.msra.mxu0 0.0
        %326 = vmatprep.subr.mxu0 0.0
        %327 = vmatpush1.msra.mxu0 0.0
        %328 = vmatprep.subr.mxu0 0.0
        %329 = vmatpush1.msra.mxu0 0.0
        %330 = vmatprep.subr.mxu0 0.0
        %331 = vmatpush1.msra.mxu0 0.0
        %332 = vmatprep.subr.mxu0 0.0
        %333 = vmatpush1.msra.mxu0 0.0
        %334 = vmatprep.mubr.f32.mxu0 0.0
        %335 = vmatmul.mubr.f32.gmra.mrb[0].mxu0 %v268
        %v336 = vpop.f32.mrb[0].mxu0
        %v337 = vadd.f32 %v264, %v336
        %v338 = vpop.f32.mrb[0].mxu0
        %339 = vdwg.mxu0
        %vm340 = vcmask 130048
        %341 = vst.msk [vmem:[%s215] sm:$0xff] %vm340, %v337
        %s342 = sand.u32 %s137, 1
        %s343 = scalar_lea.sflag [#allocation3], %s342
        %s344 = sand.u32 %s137, 1
        %s345 = smul.addr %s344, 8
        %s346 = scalar_lea.vmem [#allocation2], %s345
        // Predicated region
        $region41: #{tpu_custom_call.1} parent=39 // pred_check
          %p347 = pneg %p147
        $region42: #{tpu_custom_call.1} parent=39 // pred_check_branch
          %349 = sbr.rel (%p347) target = $region44
        $region43: #{tpu_custom_call.1} parent=39 // pred_region
          %s351 = ssub.s32 128, 128
          %352 = vsyncadd %s343, %s351
          %s353 = smul.addr %s19, 128
          %s354 = scalar_lea.hbm %s5, %s353
          %s356 = sshll.u32 %s346, 4
          %s357 = int_to_ptr.vmem [resolvable:$true] %s356
          %359 = dma.vmem_to_hbm [thread:$0]  %s357, 128, %s354, %s343
        $region44: #{tpu_custom_call.1} parent=39 // pred_fallthru
          _
      $region40: #{tpu_custom_call.1} parent=5 // pred_fallthru
        _
      %p360 = scmp.le.s32.totalorder 2, %s14
      // Predicated region
      $region45: #{tpu_custom_call.1} parent=5 // pred_check
        %p361 = pneg %p360
      $region46: #{tpu_custom_call.1} parent=5 // pred_check_branch
        %363 = sbr.rel (%p361) target = $region48
      $region47: #{tpu_custom_call.1} parent=5 // pred_region
        %s364 = ssub.s32 %s14, 2
        // Predicated region
        $region49: #{tpu_custom_call.1} parent=47 // pred_check
          %p365 = pneg %p153
        $region50: #{tpu_custom_call.1} parent=47 // pred_check_branch
          %367 = sbr.rel (%p365) target = $region52
        $region51: #{tpu_custom_call.1} parent=47 // pred_region
          %s368 = sand.u32 %s138, 1
          %s369 = scalar_lea.sflag [#allocation3], %s368
          %s370 = sand.u32 %s138, 1
          %s371 = smul.addr %s370, 8
          %s372 = scalar_lea.vmem [#allocation2], %s371
          %373 = dma.done %s369, 128
        $region52: #{tpu_custom_call.1} parent=47 // pred_fallthru
          _
      $region48: #{tpu_custom_call.1} parent=5 // pred_fallthru
        _
    $region6: #{tpu_custom_call.1} parent=1 // loop_footer
      %s18 = sadd.s32 1, %s14
    $region7: #{tpu_custom_call.1} parent=1 // loop_footer_branch
      %13 = sbr.rel target = $region3
    $region8: #{tpu_custom_call.1} parent=1 // loop_exit
      _
    %374 = vsyncpa [#allocation3], 1
    %s375 = scalar_lea.sflag [#allocation3], 1
    %376 = vsyncpa %s375, 1

</llo_original>
